<compile_context>
chip_gen: v7x
topology: tpu7x:2x2x1
jax: 0.10.0
libtpu: 0.0.40
codegen_flags: <defaults>
</compile_context>

<pallas_src>
import jax
import jax.numpy as jnp
from jax.experimental import pallas as pl
from jax.experimental.pallas import tpu as pltpu


def or_kernel(shift_ref, x_ref, wblk_ref, o_ref):
    # shift_ref: SMEM f32[1]    -> scalar (1 - bias), hoisted out of the grid loop
    # x_ref:     VMEM (TMr, K)  -> lane-dense input tile (K = G*N packed batch rows)
    # wblk_ref:  VMEM (K, G)    -> block-diagonal weights (constant block, fetched once)
    # o_ref:     VMEM (TMr, G)  -> output tile
    y = jnp.dot(x_ref[...].astype(jnp.float32), wblk_ref[...],
                preferred_element_type=jnp.float32)              # (TMr, G) f32 on MXU
    o_ref[...] = jax.nn.sigmoid(y + shift_ref[0]).astype(o_ref.dtype)


def _pack_factor(m, n):
    """Largest G packing G*N == 128 lanes, with N | 128 and G | M (else 1)."""
    if 128 % n != 0:
        return 1
    g = 128 // n
    while g > 1 and m % g != 0:
        g //= 2
    return max(g, 1)


def _pick_row_tile(m_rows, k, in_itemsize, out_itemsize, vmem_budget=24 << 20):
    """Rows per grid step: multiple of 8 (or the full extent), VMEM-budgeted."""
    if m_rows <= 8:
        return m_rows                               # single block == full array dim
    lanes_in = max(k, 128)                          # minor dim pads to 128 lanes in VMEM
    per_row = 2 * (lanes_in * in_itemsize + 128 * out_itemsize)   # double-buffered in+out
    tmr = max(8, min(int(vmem_budget // per_row), 16384))
    tmr = (tmr // 8) * 8
    return min(tmr, pl.cdiv(m_rows, 8) * 8)


def or_forward(x, weights, bias):
    """x: (B, 2, N), weights: (N,), bias: (1,) -> (B, 2) (same dtype as x)."""
    B, two, N = x.shape
    assert two == 2
    M = B * two
    dtype = x.dtype
    in_itemsize = jnp.dtype(dtype).itemsize
    out_itemsize = in_itemsize

    G = _pack_factor(M, N)
    K = G * N
    m_rows = M // G

    # Copy-free layout plumbing: both reshapes preserve row-major element order.
    x_rows = x.reshape(M, N).reshape(m_rows, K)

    # Block-diagonal weights: wblk[g*N + j, g] = weights[j].  Built once, tiny.
    w = weights.astype(jnp.float32)
    if G == 1:
        wblk = w.reshape(N, 1)
    else:
        wblk = (jnp.eye(G, dtype=jnp.float32)[:, None, :] * w[None, :, None]).reshape(K, G)

    shift = (1.0 - bias.reshape(-1)[:1]).astype(jnp.float32)     # (1,) SMEM scalar

    tmr = _pick_row_tile(m_rows, K, in_itemsize, out_itemsize)
    grid = (pl.cdiv(m_rows, tmr),)                               # no padding of M

    out = pl.pallas_call(
        or_kernel,
        out_shape=jax.ShapeDtypeStruct((m_rows, G), dtype),
        grid=grid,
        in_specs=[
            pl.BlockSpec(memory_space=pltpu.MemorySpace.SMEM),   # hoisted (1 - bias)
            pl.BlockSpec((tmr, K), lambda i: (i, 0)),            # lane-dense x tile
            pl.BlockSpec((K, G), lambda i: (0, 0)),              # weights, constant block
        ],
        out_specs=pl.BlockSpec((tmr, G), lambda i: (i, 0)),
        compiler_params=pltpu.CompilerParams(
            dimension_semantics=("parallel",),   # shards row tiles across both TCs on v7x
            vmem_limit_bytes=32 * 1024 * 1024,
        ),
        cost_estimate=pl.CostEstimate(
            flops=2 * M * N,
            transcendentals=M,
            bytes_accessed=M * N * in_itemsize + M * out_itemsize + K * G * 4 + 4,
        ),
    )(shift, x_rows, wblk)

    return out.reshape(B, 2)


def or_reference(x, weights, bias):
    return jax.nn.sigmoid(1.0 - bias + jnp.einsum("btn,n->bt", x, weights))


if __name__ == "__main__":
    B, N = 8, 32                    # batch, num_inputs  -> x: (8, 2, 32)
    key = jax.random.PRNGKey(0)
    kx, kw, kb = jax.random.split(key, 3)

    x = jax.random.normal(kx, (B, 2, N), dtype=jnp.float32)
    # LogicNeuron init is constant_(1.0); use values inside the projected domain
    # (weights in [0,1], bias in [0, N]) so the test is non-trivial.
    weights = jax.random.uniform(kw, (N,), dtype=jnp.float32)
    bias = jax.random.uniform(kb, (1,), dtype=jnp.float32, minval=0.0, maxval=2.0)

    out = or_forward(x, weights, bias)
    jax.block_until_ready(out)

    ref = or_reference(x, weights, bias)
    assert out.shape == (B, 2)
    assert jnp.allclose(out, ref, atol=1e-5, rtol=1e-5)
    print("KERNEL_OK")
</pallas_src>

<mosaic_0001>
module attributes {stable_mosaic.version = 11 : i64} {
  func.func @or_kernel(%arg0: i32, %arg1: memref<1xf32, #tpu.memory_space<smem>>, %arg2: memref<4x128xf32, #tpu.memory_space<vmem>>, %arg3: memref<128x4xf32, #tpu.memory_space<vmem>>, %arg4: memref<4x4xf32, #tpu.memory_space<vmem>>) attributes {dimension_semantics = [#tpu.dimension_semantics<parallel>], iteration_bounds = array<i64: 1>, scalar_prefetch = 0 : i64, scratch_operands = 0 : i64, tpu.core_type = #tpu.core_type<tc>, window_params = [{transform_indices = @transform_0, window_bounds = array<i64: 1>}, {transform_indices = @transform_1, window_bounds = array<i64: 4, 128>}, {pipeline_mode = #tpu.pipeline_mode<synchronous>, transform_indices = @transform_2, window_bounds = array<i64: 128, 4>}, {transform_indices = @transform_3, window_bounds = array<i64: 4, 4>}]} {
    %c0 = arith.constant 0 : index
    %c0_0 = arith.constant 0 : index
    %0 = vector.load %arg2[%c0, %c0_0] : memref<4x128xf32, #tpu.memory_space<vmem>>, vector<4x128xf32>
    %c0_1 = arith.constant 0 : index
    %c0_2 = arith.constant 0 : index
    %1 = vector.load %arg3[%c0_1, %c0_2] : memref<128x4xf32, #tpu.memory_space<vmem>>, vector<128x4xf32>
    %cst = arith.constant dense<0.000000e+00> : vector<4x4xf32>
    %2 = tpu.matmul %0, %1, %cst {dimension_numbers = #tpu.dot_dimension_numbers<[1], [0], [0], [1], [0, 0, 1, 1], [], []>} : vector<4x128xf32>, vector<128x4xf32>, vector<4x4xf32> -> vector<4x4xf32>
    %c0_3 = arith.constant 0 : index
    %3 = memref.load %arg1[%c0_3] : memref<1xf32, #tpu.memory_space<smem>>
    %4 = vector.broadcast %3 : f32 to vector<4x4xf32>
    %5 = arith.addf %2, %4 : vector<4x4xf32>
    %6 = arith.negf %5 : vector<4x4xf32>
    %7 = math.exp %6 : vector<4x4xf32>
    %cst_4 = arith.constant 1.000000e+00 : f32
    %8 = vector.broadcast %cst_4 : f32 to vector<4x4xf32>
    %9 = arith.addf %8, %7 : vector<4x4xf32>
    %10 = arith.divf %8, %9 : vector<4x4xf32>
    %c0_5 = arith.constant 0 : index
    %c0_6 = arith.constant 0 : index
    %11 = vector.load %arg4[%c0_5, %c0_6] : memref<4x4xf32, #tpu.memory_space<vmem>>, vector<4x4xf32>
    tpu.vector_store %arg4[%c0_5, %c0_6], %10 {strides = array<i32>} : memref<4x4xf32, #tpu.memory_space<vmem>>, vector<4x4xf32>,
    return
  }
  func.func @transform_0(%arg0: i32) -> i32 {
    %c0_i32 = arith.constant 0 : i32
    %c0_i32_0 = arith.constant 0 : i32
    return %c0_i32 : i32
  }
  func.func @transform_1(%arg0: i32) -> (i32, i32) {
    %c0_i32 = arith.constant 0 : i32
    %c0_i32_0 = arith.constant 0 : i32
    return %arg0, %c0_i32 : i32, i32
  }
  func.func @transform_2(%arg0: i32) -> (i32, i32) {
    %c0_i32 = arith.constant 0 : i32
    %c0_i32_0 = arith.constant 0 : i32
    %c0_i32_1 = arith.constant 0 : i32
    return %c0_i32, %c0_i32_0 : i32, i32
  }
  func.func @transform_3(%arg0: i32) -> (i32, i32) {
    %c0_i32 = arith.constant 0 : i32
    %c0_i32_0 = arith.constant 0 : i32
    return %arg0, %c0_i32 : i32, i32
  }
}

</mosaic_0001>

<llo_original>
// kernel: tpu_custom_call.1
$region0: #{tpu_custom_call.1}
  #allocation0 [shape = 'u32[]', space=smem, size = 0x4, offset = 0x4, fixed_abs, tag = 'smem constant byte address 0x4 - core index']
  #allocation1 [shape = 'u32[144,128]{1,0:T(1,128)}', space=vmem, size = 0x12000, scoped, tag = 'internal scratch']
  #allocation2 [shape = 'f32[1]{0:T(128)S(6)}', space=smem, size = 0x200, scoped, tag = 'scoped memory for tpu_custom_call.1']
  %s0 = inlined_call_operand.<no memory space> [shape: f32[1], index: 0, kind: input, shape index: {}]
  %s1 = inlined_call_operand.vmem [shape: f32[4,128], index: 1, kind: input, shape index: {}]
  %s2 = inlined_call_operand.vmem [shape: f32[128,4], index: 2, kind: input, shape index: {}]
  %s3 = inlined_call_operand.hbm [shape: f32[4,4], index: 3, kind: output, shape index: {}]
  %s4 = sld [smem:[#allocation0]]
  $region22: #{tpu_custom_call.1} parent=0
    _
  %s6 = ssub.s32 1, %s4
  %s7 = scalar_select 0, %s6, %s4
  %8 = sst [smem:[#allocation2]] %s0
  $region1: #{tpu_custom_call.1} parent=0
    #allocation3 [shape = 'u8[2048]{0}', space=vmem, size = 0x800, scoped, tag = 'output window, operand 0, single buffered']
    #allocation4 [shape = 's32[1]{0}', space=sflag, size = 0x4, scoped, tag = 'scoped memory for tpu_custom_call.1']
    %9 = vsyncpa [#allocation4], 0
    // Predicated region
    $region2: #{tpu_custom_call.1} parent=1 // pred_check
      _
    $region3: #{tpu_custom_call.1} parent=1 // pred_check_branch
      %11 = sbr.rel (0) target = $region5
    $region4: #{tpu_custom_call.1} parent=1 // pred_region
      _
    $region5: #{tpu_custom_call.1} parent=1 // pred_fallthru
      _
    // Predicated region
    $region6: #{tpu_custom_call.1} parent=1 // pred_check
      _
    $region7: #{tpu_custom_call.1} parent=1 // pred_check_branch
      %13 = sbr.rel (0) target = $region9
    $region8: #{tpu_custom_call.1} parent=1 // pred_region
      _
    $region9: #{tpu_custom_call.1} parent=1 // pred_fallthru
      _
    // Predicated region
    $region10: #{tpu_custom_call.1} parent=1 // pred_check
      _
    $region11: #{tpu_custom_call.1} parent=1 // pred_check_branch
      %15 = sbr.rel (0) target = $region13
    $region12: #{tpu_custom_call.1} parent=1 // pred_region
      _
    $region13: #{tpu_custom_call.1} parent=1 // pred_fallthru
      _
    %v16 = vld [vmem:[%s1] sm:$0xf]
    %v17 = vld [vmem:[%s2] sm:$0xff]
    %v18 = vld [vmem:[%s2 + $0x8] sm:$0xff]
    %v19 = vld [vmem:[%s2 + $0x10] sm:$0xff]
    %v20 = vld [vmem:[%s2 + $0x18] sm:$0xff]
    %v21 = vld [vmem:[%s2 + $0x20] sm:$0xff]
    %v22 = vld [vmem:[%s2 + $0x28] sm:$0xff]
    %v23 = vld [vmem:[%s2 + $0x30] sm:$0xff]
    %v24 = vld [vmem:[%s2 + $0x38] sm:$0xff]
    %v25 = vld [vmem:[%s2 + $0x40] sm:$0xff]
    %v26 = vld [vmem:[%s2 + $0x48] sm:$0xff]
    %v27 = vld [vmem:[%s2 + $0x50] sm:$0xff]
    %v28 = vld [vmem:[%s2 + $0x58] sm:$0xff]
    %v29 = vld [vmem:[%s2 + $0x60] sm:$0xff]
    %v30 = vld [vmem:[%s2 + $0x68] sm:$0xff]
    %v31 = vld [vmem:[%s2 + $0x70] sm:$0xff]
    %v32 = vld [vmem:[%s2 + $0x78] sm:$0xff]
    %s33 = sld [smem:[#allocation2]]
    %v34 = vstv %s33
    %35 = vmatprep.subr.mxu0 0.0
    %36 = vmatpush1.msra.mxu0 %v17
    %37 = vmatprep.subr.mxu0 0.0
    %38 = vmatpush1.msra.mxu0 %v18
    %39 = vmatprep.subr.mxu0 0.0
    %40 = vmatpush1.msra.mxu0 %v19
    %41 = vmatprep.subr.mxu0 0.0
    %42 = vmatpush1.msra.mxu0 %v20
    %43 = vmatprep.subr.mxu0 0.0
    %44 = vmatpush1.msra.mxu0 %v21
    %45 = vmatprep.subr.mxu0 0.0
    %46 = vmatpush1.msra.mxu0 %v22
    %47 = vmatprep.subr.mxu0 0.0
    %48 = vmatpush1.msra.mxu0 %v23
    %49 = vmatprep.subr.mxu0 0.0
    %50 = vmatpush1.msra.mxu0 %v24
    %51 = vmatprep.subr.mxu0 0.0
    %52 = vmatpush1.msra.mxu0 %v25
    %53 = vmatprep.subr.mxu0 0.0
    %54 = vmatpush1.msra.mxu0 %v26
    %55 = vmatprep.subr.mxu0 0.0
    %56 = vmatpush1.msra.mxu0 %v27
    %57 = vmatprep.subr.mxu0 0.0
    %58 = vmatpush1.msra.mxu0 %v28
    %59 = vmatprep.subr.mxu0 0.0
    %60 = vmatpush1.msra.mxu0 %v29
    %61 = vmatprep.subr.mxu0 0.0
    %62 = vmatpush1.msra.mxu0 %v30
    %63 = vmatprep.subr.mxu0 0.0
    %64 = vmatpush1.msra.mxu0 %v31
    %65 = vmatprep.subr.mxu0 0.0
    %66 = vmatpush1.msra.mxu0 %v32
    %67 = vmatprep.subr.mxu0 0.0
    %68 = vmatpush1.msra.mxu0 0.0
    %69 = vmatprep.subr.mxu0 0.0
    %70 = vmatpush1.msra.mxu0 0.0
    %71 = vmatprep.subr.mxu0 0.0
    %72 = vmatpush1.msra.mxu0 0.0
    %73 = vmatprep.subr.mxu0 0.0
    %74 = vmatpush1.msra.mxu0 0.0
    %75 = vmatprep.subr.mxu0 0.0
    %76 = vmatpush1.msra.mxu0 0.0
    %77 = vmatprep.subr.mxu0 0.0
    %78 = vmatpush1.msra.mxu0 0.0
    %79 = vmatprep.subr.mxu0 0.0
    %80 = vmatpush1.msra.mxu0 0.0
    %81 = vmatprep.subr.mxu0 0.0
    %82 = vmatpush1.msra.mxu0 0.0
    %83 = vmatprep.subr.mxu0 0.0
    %84 = vmatpush1.msra.mxu0 0.0
    %85 = vmatprep.subr.mxu0 0.0
    %86 = vmatpush1.msra.mxu0 0.0
    %87 = vmatprep.subr.mxu0 0.0
    %88 = vmatpush1.msra.mxu0 0.0
    %89 = vmatprep.subr.mxu0 0.0
    %90 = vmatpush1.msra.mxu0 0.0
    %91 = vmatprep.subr.mxu0 0.0
    %92 = vmatpush1.msra.mxu0 0.0
    %93 = vmatprep.subr.mxu0 0.0
    %94 = vmatpush1.msra.mxu0 0.0
    %95 = vmatprep.subr.mxu0 0.0
    %96 = vmatpush1.msra.mxu0 0.0
    %97 = vmatprep.subr.mxu0 0.0
    %98 = vmatpush1.msra.mxu0 0.0
    %99 = vmatprep.mubr.f32.mxu0 0.0
    %100 = vmatmul.mubr.f32.gmra.mrb[0].mxu0 %v16
    %v101 = vpop.f32.mrb[0].mxu0
    %v102 = vadd.f32 %v34, %v101
    %v103 = vpop.f32.mrb[0].mxu0
    %104 = vdwg.mxu0
    %v105 = vxor.u32 %v102, 2147483648
    %v106 = vmul.f32 %v105, 1.442695
    %v107 = vpow.pop %v106
    %v108 = vadd.f32 %v107, 1.0
    %v109 = vrcp.pop %v108
    %v110 = vmul.f32 1.0, %v109
    %vm111 = vcmask 27648
    %112 = vst.msk [vmem:[#allocation3] sm:$0xf] %vm111, %v110
    // Predicated region
    $region14: #{tpu_custom_call.1} parent=1 // pred_check
      _
    $region15: #{tpu_custom_call.1} parent=1 // pred_check_branch
      %114 = sbr.rel (0) target = $region17
    $region16: #{tpu_custom_call.1} parent=1 // pred_region
      %s116 = ssub.s32 64, 64
      %117 = vsyncadd [#allocation4], %s116
      %s119 = sshll.u32 [#allocation3], 4
      %s120 = int_to_ptr.vmem [resolvable:$true] %s119
      %122 = dma.vmem_to_hbm [thread:$0]  %s120, 64, %s3, [#allocation4]
    $region17: #{tpu_custom_call.1} parent=1 // pred_fallthru
      _
    // Predicated region
    $region18: #{tpu_custom_call.1} parent=1 // pred_check
      _
    $region19: #{tpu_custom_call.1} parent=1 // pred_check_branch
      %124 = sbr.rel (0) target = $region21
    $region20: #{tpu_custom_call.1} parent=1 // pred_region
      %125 = dma.done [#allocation4], 64
    $region21: #{tpu_custom_call.1} parent=1 // pred_fallthru
      _
    %126 = vsyncpa [#allocation4], 1

</llo_original>
